<compile_context>
chip_gen: v7x
topology: tpu7x:2x2x1
jax: 0.10.0
libtpu: 0.0.40
codegen_flags: <defaults>
</compile_context>

<pallas_src>
import math

import jax
import jax.numpy as jnp
from jax.experimental import pallas as pl
from jax.experimental.pallas import tpu as pltpu


NEG_INF = -1e30   # finite mask value -> no inf-inf NaN hazard in online softmax


# --------------------------- hardware-aware defaults --------------------------


def _hw_defaults():
    vmem_cap = None
    chip = ""
    try:
        info = pltpu.get_tpu_info()
        vmem_cap = getattr(info, "vmem_capacity_bytes", None)
        chip = str(getattr(info, "chip_version", "") or "")
    except Exception:
        pass
    if vmem_cap is not None and vmem_cap >= 100 * 1024 * 1024:
        # 128 MiB VMEM parts (v5e / v6e): big tiles, ~96 MiB scoped limit.
        attn_t = 128 if "5" in chip else 256          # v5e MXU is 128-wide
        return dict(vmem_limit=96 * 1024 * 1024,
                    proj_tm=512, proj_tn=512, proj_tk=1024,
                    attn_tq=attn_t, attn_tk=attn_t)
    # v7x (64 MiB physical) or unknown: conservative limit.  Attention has a
    # per-head grid axis, so its working set stays flat even at 256-wide tiles
    # and the extra grid points feed both TensorCores.
    return dict(vmem_limit=48 * 1024 * 1024,
                proj_tm=256, proj_tn=256, proj_tk=512,
                attn_tq=256, attn_tk=256)


def _tile(dim, target, unit):
    """Largest tile <= target that divides `dim` and is a multiple of `unit`;
    falls back to the full dim (always a legal BlockSpec block)."""
    if dim <= target:
        return dim
    t = (target // unit) * unit
    while t >= unit:
        if dim % t == 0:
            return t
        t -= unit
    return dim


# --------------------- fused RMSNorm + matmul (+bias) -------------------------


def rmsnorm_matmul(x, gamma, w, b, eps, *, out_dtype, tm_target, tn_target,
                   vmem_limit):
    """y = (gamma * rmsnorm(x)) @ w + b.   x:(M,K) f32, w:(K,N) bf16, b:(N,) f32.
    The normalized (bf16) activation tile is cached in VMEM scratch and computed
    only at the first N tile of each row block."""
    M, K = x.shape
    N = w.shape[1]
    tm = _tile(M, tm_target, 8)
    tn = _tile(N, tn_target, 128)

    def kernel(x_ref, g_ref, w_ref, b_ref, o_ref, xn_ref):
        @pl.when(pl.program_id(1) == 0)
        def _():
            xv = x_ref[...]
            ms = jnp.mean(xv * xv, axis=-1, keepdims=True)
            xn_ref[...] = (xv * jax.lax.rsqrt(ms + eps) * g_ref[...]
                           ).astype(jnp.bfloat16)

        o_ref[...] = (
            jnp.dot(xn_ref[...], w_ref[...], preferred_element_type=jnp.float32)
            + b_ref[...]
        ).astype(out_dtype)

    return pl.pallas_call(
        kernel,
        out_shape=jax.ShapeDtypeStruct((M, N), out_dtype),
        grid=(M // tm, N // tn),
        in_specs=[
            pl.BlockSpec((tm, K), lambda i, j: (i, 0)),
            pl.BlockSpec((1, K), lambda i, j: (0, 0)),
            pl.BlockSpec((K, tn), lambda i, j: (0, j)),
            pl.BlockSpec((1, tn), lambda i, j: (0, j)),
        ],
        out_specs=pl.BlockSpec((tm, tn), lambda i, j: (i, j)),
        scratch_shapes=[pltpu.VMEM((tm, K), jnp.bfloat16)],
        compiler_params=pltpu.CompilerParams(
            # N axis must be sequential (scratch written at j == 0).
            dimension_semantics=("parallel", "arbitrary"),
            vmem_limit_bytes=vmem_limit,
        ),
    )(x, gamma.reshape(1, K), w, b.reshape(1, N))


# ------------- K-tiled matmul with bias + residual fused epilogue -------------


def matmul_bias_residual(x, w, b, res, *, tm_target, tn_target, tk_target,
                         vmem_limit):
    """y = x @ w + b + res.  x:(M,K) bf16, w bf16, b/res/out f32.
    Accumulates directly into the resident output block (no acc scratch)."""
    M, K = x.shape
    N = w.shape[1]
    tm = _tile(M, tm_target, 8)
    tn = _tile(N, tn_target, 128)
    tk = _tile(K, tk_target, 128)

    def kernel(x_ref, w_ref, b_ref, r_ref, o_ref):
        @pl.when(pl.program_id(2) == 0)
        def _():
            o_ref[...] = r_ref[...] + b_ref[...]

        o_ref[...] += jnp.dot(x_ref[...], w_ref[...],
                              preferred_element_type=jnp.float32)

    return pl.pallas_call(
        kernel,
        out_shape=jax.ShapeDtypeStruct((M, N), jnp.float32),
        grid=(M // tm, N // tn, K // tk),
        in_specs=[
            pl.BlockSpec((tm, tk), lambda i, j, k: (i, k)),
            pl.BlockSpec((tk, tn), lambda i, j, k: (k, j)),
            pl.BlockSpec((1, tn), lambda i, j, k: (0, j)),
            pl.BlockSpec((tm, tn), lambda i, j, k: (i, j)),
        ],
        out_specs=pl.BlockSpec((tm, tn), lambda i, j, k: (i, j)),
        compiler_params=pltpu.CompilerParams(
            dimension_semantics=("parallel", "parallel", "arbitrary"),
            vmem_limit_bytes=vmem_limit,
        ),
    )(x, w, b.reshape(1, N), res)


# -------------- fused RMSNorm + GeGLU projection + sigmoid gate ---------------


def rmsnorm_geglu(x, gamma, w_u, w_g, b_u, b_g, eps, *, tm_target, tn_target,
                  vmem_limit):
    """out = (xn @ w_u + b_u) * sigmoid(xn @ w_g + b_g), xn = gamma*rmsnorm(x).
    (The reference 'GeGLU' module is a sigmoid gate; reproduced exactly.)
    Normalized activation cached in VMEM scratch; bf16 output."""
    M, K = x.shape
    N = w_u.shape[1]
    tm = _tile(M, tm_target, 8)
    tn = _tile(N, tn_target, 128)

    def kernel(x_ref, g_ref, wu_ref, wg_ref, bu_ref, bg_ref, o_ref, xn_ref):
        @pl.when(pl.program_id(1) == 0)
        def _():
            xv = x_ref[...]
            ms = jnp.mean(xv * xv, axis=-1, keepdims=True)
            xn_ref[...] = (xv * jax.lax.rsqrt(ms + eps) * g_ref[...]
                           ).astype(jnp.bfloat16)

        xn = xn_ref[...]
        u = jnp.dot(xn, wu_ref[...], preferred_element_type=jnp.float32) + bu_ref[...]
        g = jnp.dot(xn, wg_ref[...], preferred_element_type=jnp.float32) + bg_ref[...]
        o_ref[...] = (u * jax.nn.sigmoid(g)).astype(jnp.bfloat16)

    return pl.pallas_call(
        kernel,
        out_shape=jax.ShapeDtypeStruct((M, N), jnp.bfloat16),
        grid=(M // tm, N // tn),
        in_specs=[
            pl.BlockSpec((tm, K), lambda i, j: (i, 0)),
            pl.BlockSpec((1, K), lambda i, j: (0, 0)),
            pl.BlockSpec((K, tn), lambda i, j: (0, j)),
            pl.BlockSpec((K, tn), lambda i, j: (0, j)),
            pl.BlockSpec((1, tn), lambda i, j: (0, j)),
            pl.BlockSpec((1, tn), lambda i, j: (0, j)),
        ],
        out_specs=pl.BlockSpec((tm, tn), lambda i, j: (i, j)),
        scratch_shapes=[pltpu.VMEM((tm, K), jnp.bfloat16)],
        compiler_params=pltpu.CompilerParams(
            dimension_semantics=("parallel", "arbitrary"),
            vmem_limit_bytes=vmem_limit,
        ),
    )(x, gamma.reshape(1, K), w_u, w_g, b_u.reshape(1, N), b_g.reshape(1, N))


# ----------------- flash-style sliding-window attention ------------------------


def sliding_window_attention(qkv, cos, sin, window, nH, D, *, tq_target,
                             tk_target, vmem_limit):
    """qkv: (B, T, 3*H) bf16 laid out as [q heads | k heads | v heads] per token;
    cos, sin: (T, D) f32.  Returns (B, T, H) bf16 in token-major layout (free
    reshape to (B*T, H)).  Grid: (B, head, q_block, kv_block).

    Online softmax with the reference mask (allowed: j >= i - window + 1, no
    causal upper bound).  RoPE in-kernel (pltpu.roll on the XLU); Q-RoPE cached
    per q block.  Window-skipped K/V blocks neither compute nor DMA (index maps
    clamp to the first in-window block, so the pipeline elides the copy)."""
    B, T, threeH = qkv.shape
    H = threeH // 3
    if D % 128 != 0:
        raise ValueError("head-sliced attention layout requires head_dim % 128 == 0")
    scale = 1.0 / math.sqrt(D)
    tq = _tile(T, tq_target, 8)
    tk = _tile(T, tk_target, 8)
    n_q = T // tq
    n_k = T // tk

    def kv_idx(i, j):
        # First kv block with any in-window column for this q block.
        j_min = jnp.maximum((i * tq - window + 1) // tk, 0)
        return jnp.maximum(j, j_min)

    def kernel(q_ref, k_ref, v_ref, cq_ref, sq_ref, ck_ref, sk_ref, o_ref,
               qr_sc, m_sc, l_sc, acc_sc):
        qi = pl.program_id(2)
        ki = pl.program_id(3)

        lane = jax.lax.broadcasted_iota(jnp.int32, (1, D), 1)
        sign = jnp.where(lane < D // 2, -1.0, 1.0)   # rotate_half = roll * sign

        @pl.when(ki == 0)
        def _():
            m_sc[...] = jnp.full_like(m_sc, NEG_INF)
            l_sc[...] = jnp.zeros_like(l_sc)
            acc_sc[...] = jnp.zeros_like(acc_sc)
            qv = q_ref[0].astype(jnp.float32)
            qr_sc[...] = (qv * cq_ref[...]
                          + pltpu.roll(qv, D // 2, 1) * (sign * sq_ref[...])
                          ).astype(jnp.bfloat16)

        # Blocks entirely below the sliding-window band: no compute (and their
        # DMA is elided because the index maps re-point them at the first
        # in-window block).
        not_skipped = (ki * tk + tk - 1) >= (qi * tq - window + 1)

        @pl.when(not_skipped)
        def _():
            kv = k_ref[0].astype(jnp.float32)
            kr = (kv * ck_ref[...]
                  + pltpu.roll(kv, D // 2, 1) * (sign * sk_ref[...])
                  ).astype(jnp.bfloat16)

            s = jax.lax.dot_general(
                qr_sc[...], kr, (((1,), (1,)), ((), ())),
                preferred_element_type=jnp.float32) * scale
            ii = jax.lax.broadcasted_iota(jnp.int32, (tq, tk), 0) + qi * tq
            jj = jax.lax.broadcasted_iota(jnp.int32, (tq, tk), 1) + ki * tk
            s = jnp.where(jj >= ii - window + 1, s, NEG_INF)

            m_new = jnp.maximum(m_sc[...], jnp.max(s, axis=-1, keepdims=True))
            alpha = jnp.exp(m_sc[...] - m_new)
            # No post-exp re-mask: masked entries are exp(NEG_INF - m) == 0, and
            # rows that are fully masked in early blocks get annihilated by
            # alpha == 0 once their first in-window column arrives.
            p = jnp.exp(s - m_new)
            l_sc[...] = alpha * l_sc[...] + jnp.sum(p, axis=-1, keepdims=True)
            acc_sc[...] = alpha * acc_sc[...] + jnp.dot(
                p.astype(jnp.bfloat16), v_ref[0],
                preferred_element_type=jnp.float32)
            m_sc[...] = m_new

        @pl.when(ki == pl.num_programs(3) - 1)
        def _():
            # TODO(synk): attention dropout skipped (eval-mode semantics).
            o_ref[0] = (acc_sc[...] * pl.reciprocal(l_sc[...], approx=False)
                        ).astype(o_ref.dtype)

    return pl.pallas_call(
        kernel,
        out_shape=jax.ShapeDtypeStruct((B, T, H), jnp.bfloat16),
        grid=(B, nH, n_q, n_k),
        in_specs=[
            pl.BlockSpec((1, tq, D), lambda b, h, i, j: (b, i, h)),              # q head h
            pl.BlockSpec((1, tk, D), lambda b, h, i, j: (b, kv_idx(i, j), nH + h)),      # k
            pl.BlockSpec((1, tk, D), lambda b, h, i, j: (b, kv_idx(i, j), 2 * nH + h)),  # v
            pl.BlockSpec((tq, D), lambda b, h, i, j: (i, 0)),                    # cos(q)
            pl.BlockSpec((tq, D), lambda b, h, i, j: (i, 0)),                    # sin(q)
            pl.BlockSpec((tk, D), lambda b, h, i, j: (kv_idx(i, j), 0)),         # cos(k)
            pl.BlockSpec((tk, D), lambda b, h, i, j: (kv_idx(i, j), 0)),         # sin(k)
        ],
        out_specs=pl.BlockSpec((1, tq, D), lambda b, h, i, j: (b, i, h)),
        scratch_shapes=[
            pltpu.VMEM((tq, D), jnp.bfloat16),   # cached rotated Q
            pltpu.VMEM((tq, 1), jnp.float32),    # m (running max)
            pltpu.VMEM((tq, 1), jnp.float32),    # l (running denom)
            pltpu.VMEM((tq, D), jnp.float32),    # acc
        ],
        compiler_params=pltpu.CompilerParams(
            dimension_semantics=("parallel", "parallel", "parallel", "arbitrary"),
            vmem_limit_bytes=vmem_limit,
        ),
    )(qkv, qkv, qkv, cos, sin, cos, sin)


# ------------------------------ model glue ------------------------------------


def init_params(key, cfg):
    """Weights are stored in bf16 (MXU operand dtype); biases / norms in f32.
    GeGLU weight and bias are pre-split into their two halves."""
    L = cfg["num_layers"]
    H = cfg["hidden_size"]
    I = cfg["intermediate_size"]
    V = cfg["vocab_size"]
    std = 0.02 / math.sqrt(2 * L)
    keys = iter(jax.random.split(key, 2 + 6 * L))

    def lin(din, dout):
        w = (std * jax.random.normal(next(keys), (din, dout), jnp.float32)
             ).astype(jnp.bfloat16)
        b = jnp.zeros((dout,), jnp.float32)
        return (w, b)

    params = {
        "embed": 0.02 * jax.random.normal(next(keys), (V, H), jnp.float32),
        "layers": [],
        "norm": jnp.ones((H,), jnp.float32),
    }
    for _ in range(L):
        params["layers"].append(
            {
                "attn_norm": jnp.ones((H,), jnp.float32),
                "qkv": lin(H, 3 * H),          # fused [Wq | Wk | Wv]
                "o": lin(H, H),
                "mlp_norm": jnp.ones((H,), jnp.float32),
                "geglu_u": lin(H, I),          # value half
                "geglu_g": lin(H, I),          # gate half
                "mlp_out": lin(I, H),
            }
        )
    params["lm_head"] = lin(H, V)
    return params


def yinggem_forward(params, tokens, cfg, hw):
    B, T = tokens.shape
    H = cfg["hidden_size"]
    nH = cfg["num_heads"]
    D = cfg["head_dim"]
    eps = cfg["eps"]
    window = cfg["window"]

    # TODO(synk): embedding gather kept in XLA glue (data-dependent gather).
    x2d = jnp.take(params["embed"], tokens.reshape(-1), axis=0)      # (B*T, H) f32

    # RoPE tables (tiny; rotation itself is applied inside the attention kernel).
    inv_freq = 1.0 / (cfg["theta"] ** (jnp.arange(0, D, 2, dtype=jnp.float32) / D))
    t = jnp.arange(T, dtype=jnp.float32)
    freqs = jnp.outer(t, inv_freq)
    freqs = jnp.concatenate([freqs, freqs], axis=-1)                 # (T, D)
    cos_tab = jnp.cos(freqs)
    sin_tab = jnp.sin(freqs)

    proj_kw = dict(tm_target=hw["proj_tm"], tn_target=hw["proj_tn"],
                   vmem_limit=hw["vmem_limit"])
    res_kw = dict(tm_target=hw["proj_tm"], tn_target=hw["proj_tn"],
                  tk_target=hw["proj_tk"], vmem_limit=hw["vmem_limit"])

    for layer in params["layers"]:
        # --- attention block: fused RMSNorm + QKV matmul (bf16 out) ---
        wqkv, bqkv = layer["qkv"]
        qkv = rmsnorm_matmul(x2d, layer["attn_norm"], wqkv, bqkv, eps,
                             out_dtype=jnp.bfloat16, **proj_kw)       # (B*T, 3H)
        qkv3 = qkv.reshape(B, T, 3 * H)                               # free reshape
        attn = sliding_window_attention(
            qkv3, cos_tab, sin_tab, window, nH, D,
            tq_target=hw["attn_tq"], tk_target=hw["attn_tk"],
            vmem_limit=hw["vmem_limit"])                              # (B, T, H) bf16
        attn2d = attn.reshape(B * T, H)                               # free reshape
        # o_proj with bias + residual fused into its epilogue (f32 residual stream).
        wo, bo = layer["o"]
        x2d = matmul_bias_residual(attn2d, wo, bo, x2d, **res_kw)

        # --- MLP block: fused RMSNorm + GeGLU proj + sigmoid gate (bf16 out) ---
        wu, bu = layer["geglu_u"]
        wg, bg = layer["geglu_g"]
        gated = rmsnorm_geglu(x2d, layer["mlp_norm"], wu, wg, bu, bg, eps,
                              **proj_kw)                              # (B*T, I)
        wm, bm = layer["mlp_out"]
        x2d = matmul_bias_residual(gated, wm, bm, x2d, **res_kw)

    # Final RMSNorm fused with the lm_head matmul; logits stay f32.
    wl, bl = params["lm_head"]
    logits = rmsnorm_matmul(x2d, params["norm"], wl, bl, eps,
                            out_dtype=jnp.float32, **proj_kw)
    return logits.reshape(B, T, cfg["vocab_size"])


if __name__ == "__main__":
    cfg = dict(
        vocab_size=512,
        hidden_size=256,
        num_heads=2,
        head_dim=128,          # num_heads * head_dim == hidden_size; D % 128 == 0
        intermediate_size=512,
        num_layers=2,
        window=8,              # attention_window
        theta=10000.0,         # rope_theta
        eps=1e-6,              # rms_norm_eps
    )
    B, T = 2, 16

    hw = _hw_defaults()
    root = jax.random.PRNGKey(0)
    k_params, k_tokens = jax.random.split(root)
    params = init_params(k_params, cfg)
    tokens = jax.random.randint(k_tokens, (B, T), 0, cfg["vocab_size"],
                                dtype=jnp.int32)

    logits = yinggem_forward(params, tokens, cfg, hw)
    jax.block_until_ready(logits)
    assert logits.shape == (B, T, cfg["vocab_size"])
    assert logits.dtype == jnp.float32
    assert bool(jnp.all(jnp.isfinite(logits)))
    print("KERNEL_OK")
</pallas_src>

<mosaic_0001>
module attributes {stable_mosaic.version = 11 : i64} {
  func.func @kernel(%arg0: i32, %arg1: i32, %arg2: memref<32x256xf32, #tpu.memory_space<vmem>>, %arg3: memref<1x256xf32, #tpu.memory_space<vmem>>, %arg4: memref<256x256xbf16, #tpu.memory_space<vmem>>, %arg5: memref<1x256xf32, #tpu.memory_space<vmem>>, %arg6: memref<32x256xbf16, #tpu.memory_space<vmem>>, %arg7: memref<32x256xbf16, #tpu.memory_space<vmem>>) attributes {dimension_semantics = [#tpu.dimension_semantics<parallel>, #tpu.dimension_semantics<arbitrary>], iteration_bounds = array<i64: 1, 3>, scalar_prefetch = 0 : i64, scratch_operands = 1 : i64, tpu.core_type = #tpu.core_type<tc>, window_params = [{transform_indices = @transform_0, window_bounds = array<i64: 32, 256>}, {pipeline_mode = #tpu.pipeline_mode<synchronous>, transform_indices = @transform_1, window_bounds = array<i64: 1, 256>}, {transform_indices = @transform_2, window_bounds = array<i64: 256, 256>}, {transform_indices = @transform_3, window_bounds = array<i64: 1, 256>}, {transform_indices = @transform_4, window_bounds = array<i64: 32, 256>}]} {
    %c0_i32 = arith.constant 0 : i32
    %0 = arith.cmpi eq, %arg1, %c0_i32 : i32
    %1 = arith.extui %0 : i1 to i32
    %c0_i32_0 = arith.constant 0 : i32
    %2 = arith.cmpi ne, %1, %c0_i32_0 : i32
    scf.if %2 {
      %c0_8 = arith.constant 0 : index
      %c0_9 = arith.constant 0 : index
      %11 = vector.load %arg2[%c0_8, %c0_9] : memref<32x256xf32, #tpu.memory_space<vmem>>, vector<32x256xf32>
      %12 = arith.mulf %11, %11 : vector<32x256xf32>
      %cst_10 = arith.constant dense<0.000000e+00> : vector<32xf32>
      %13 = vector.multi_reduction <add>, %12, %cst_10 [1] : vector<32x256xf32> to vector<32xf32>
      %14 = vector.shape_cast %13 : vector<32xf32> to vector<32x1xf32>
      %cst_11 = arith.constant 2.560000e+02 : f32
      %15 = vector.broadcast %cst_11 : f32 to vector<32x1xf32>
      %16 = arith.divf %14, %15 : vector<32x1xf32>
      %cst_12 = arith.constant 9.99999997E-7 : f32
      %17 = vector.broadcast %cst_12 : f32 to vector<32x1xf32>
      %18 = arith.addf %16, %17 : vector<32x1xf32>
      %19 = math.rsqrt %18 : vector<32x1xf32>
      %20 = vector.broadcast %19 : vector<32x1xf32> to vector<32x256xf32>
      %21 = arith.mulf %11, %20 : vector<32x256xf32>
      %c0_13 = arith.constant 0 : index
      %c0_14 = arith.constant 0 : index
      %22 = vector.load %arg3[%c0_13, %c0_14] : memref<1x256xf32, #tpu.memory_space<vmem>>, vector<1x256xf32>
      %23 = vector.broadcast %22 : vector<1x256xf32> to vector<32x256xf32>
      %24 = arith.mulf %21, %23 : vector<32x256xf32>
      %25 = arith.truncf %24 : vector<32x256xf32> to vector<32x256xbf16>
      %c0_15 = arith.constant 0 : index
      %c0_16 = arith.constant 0 : index
      %26 = vector.load %arg7[%c0_15, %c0_16] : memref<32x256xbf16, #tpu.memory_space<vmem>>, vector<32x256xbf16>
      tpu.vector_store %arg7[%c0_15, %c0_16], %25 {strides = array<i32>} : memref<32x256xbf16, #tpu.memory_space<vmem>>, vector<32x256xbf16>,
    } else {
    }
    %c0 = arith.constant 0 : index
    %c0_1 = arith.constant 0 : index
    %3 = vector.load %arg7[%c0, %c0_1] : memref<32x256xbf16, #tpu.memory_space<vmem>>, vector<32x256xbf16>
    %c0_2 = arith.constant 0 : index
    %c0_3 = arith.constant 0 : index
    %4 = vector.load %arg4[%c0_2, %c0_3] : memref<256x256xbf16, #tpu.memory_space<vmem>>, vector<256x256xbf16>
    %cst = arith.constant dense<0.000000e+00> : vector<32x256xf32>
    %5 = tpu.matmul %3, %4, %cst {dimension_numbers = #tpu.dot_dimension_numbers<[1], [0], [0], [1], [0, 0, 1, 1], [], []>} : vector<32x256xbf16>, vector<256x256xbf16>, vector<32x256xf32> -> vector<32x256xf32>
    %c0_4 = arith.constant 0 : index
    %c0_5 = arith.constant 0 : index
    %6 = vector.load %arg5[%c0_4, %c0_5] : memref<1x256xf32, #tpu.memory_space<vmem>>, vector<1x256xf32>
    %7 = vector.broadcast %6 : vector<1x256xf32> to vector<32x256xf32>
    %8 = arith.addf %5, %7 : vector<32x256xf32>
    %9 = arith.truncf %8 : vector<32x256xf32> to vector<32x256xbf16>
    %c0_6 = arith.constant 0 : index
    %c0_7 = arith.constant 0 : index
    %10 = vector.load %arg6[%c0_6, %c0_7] : memref<32x256xbf16, #tpu.memory_space<vmem>>, vector<32x256xbf16>
    tpu.vector_store %arg6[%c0_6, %c0_7], %9 {strides = array<i32>} : memref<32x256xbf16, #tpu.memory_space<vmem>>, vector<32x256xbf16>,
    return
  }
  func.func @transform_0(%arg0: i32, %arg1: i32) -> (i32, i32) {
    %c0_i32 = arith.constant 0 : i32
    %c0_i32_0 = arith.constant 0 : i32
    return %arg0, %c0_i32 : i32, i32
  }
  func.func @transform_1(%arg0: i32, %arg1: i32) -> (i32, i32) {
    %c0_i32 = arith.constant 0 : i32
    %c0_i32_0 = arith.constant 0 : i32
    %c0_i32_1 = arith.constant 0 : i32
    return %c0_i32, %c0_i32_0 : i32, i32
  }
  func.func @transform_2(%arg0: i32, %arg1: i32) -> (i32, i32) {
    %c0_i32 = arith.constant 0 : i32
    %c0_i32_0 = arith.constant 0 : i32
    return %c0_i32, %arg1 : i32, i32
  }
  func.func @transform_3(%arg0: i32, %arg1: i32) -> (i32, i32) {
    %c0_i32 = arith.constant 0 : i32
    %c0_i32_0 = arith.constant 0 : i32
    return %c0_i32, %arg1 : i32, i32
  }
  func.func @transform_4(%arg0: i32, %arg1: i32) -> (i32, i32) {
    %c0_i32 = arith.constant 0 : i32
    return %arg0, %arg1 : i32, i32
  }
}

</mosaic_0001>

<llo_original>
// kernel: tpu_custom_call.1
$region0: #{tpu_custom_call.1}
  #allocation0 [shape = 'u32[]', space=smem, size = 0x4, offset = 0x4, fixed_abs, tag = 'smem constant byte address 0x4 - core index']
  #allocation1 [shape = 'u32[144,128]{1,0:T(1,128)}', space=vmem, size = 0x12000, scoped, tag = 'internal scratch']
  #allocation2 [shape = 'bf16[32,256]{1,0:T(16,128)(2,1)}', space=vmem, size = 0x4000, scoped, tag = 'scratch operand']
  %s0 = inlined_call_operand.hbm [shape: f32[32,256], index: 0, kind: input, shape index: {}]
  %s1 = inlined_call_operand.vmem [shape: f32[1,256], index: 1, kind: input, shape index: {}]
  %s2 = inlined_call_operand.hbm [shape: bf16[256,768], index: 2, kind: input, shape index: {}]
  %s3 = inlined_call_operand.vmem [shape: f32[1,768], index: 3, kind: input, shape index: {}]
  %s4 = inlined_call_operand.hbm [shape: bf16[32,768], index: 4, kind: output, shape index: {}]
  %s5 = sld [smem:[#allocation0]]
  $region61: #{tpu_custom_call.1} parent=0
    _
  %s7 = ssub.s32 1, %s5
  %s8 = scalar_select 0, %s7, %s5
  $region1: #{tpu_custom_call.1} parent=0
    #allocation3 [shape = 'u8[32768]{0}', space=vmem, size = 0x8000, scoped, tag = 'input window, operand 0, single buffered']
    #allocation4 [shape = 's32[2]{0}', space=sflag, size = 0x8, scoped, tag = 'scoped memory for tpu_custom_call.1']
    #allocation5 [shape = 's32[2]{0}', space=sflag, size = 0x8, scoped, tag = 'scoped memory for tpu_custom_call.1']
    #allocation6 [shape = 'u8[262144]{0}', space=vmem, size = 0x40000, scoped, tag = 'input window, operand 2']
    #allocation7 [shape = 's32[2]{0}', space=sflag, size = 0x8, scoped, tag = 'scoped memory for tpu_custom_call.1']
    #allocation8 [shape = 'u8[32768]{0}', space=vmem, size = 0x8000, scoped, tag = 'output window, operand 0']
    %9 = vsyncpa [#allocation4], 0
    %10 = vsyncpa [#allocation7], 0
    %s11 = scalar_lea.sflag [#allocation7], 1
    %12 = vsyncpa %s11, 0
    %13 = vsyncpa [#allocation5], 0
    %s14 = scalar_lea.sflag [#allocation5], 1
    %15 = vsyncpa %s14, 0
    loop: start=0, step=1, limit=5
    $region2: #{tpu_custom_call.1} parent=1 // loop_pre_header
      _
    $region3: #{tpu_custom_call.1} parent=1 // loop_header
      %s17 = sphi 0, %s21
      %p18 = scmp.ge.s32.totalorder %s17, 5
      %s24 = sphi 0, %s36
      %s25 = sphi 0, %s32
      %s26 = sphi 0, %s24
      %s27 = sphi 0, %s25
      %s28 = sphi 0, %s26
      %s29 = sphi 0, %s27
      %s39 = sphi 0, %s41
      %s42 = sphi 0, %s39
      %s43 = sphi 0, %s42
      %s59 = sphi 0, %s43
      %s63 = sphi 0, %s63
      %s65 = sphi 0, %s63
      %s66 = sphi 0, %s65
      %s80 = sphi 0, %s66
      %s86 = sphi 0, %s88
      %s89 = sphi 0, %s86
      %s90 = sphi 0, %s89
      %s106 = sphi 0, %s90
      %s112 = sphi 0, %s114
      %s115 = sphi 0, %s112
      %s116 = sphi 0, %s115
      %s132 = sphi 0, %s116
      %s140 = sphi 0, %s142
      %s143 = sphi 0, %s140
      %s144 = sphi 0, %s143
      %s160 = sphi 0, %s144
    $region4: #{tpu_custom_call.1} parent=1 // loop_header_branch
      %20 = sbr.rel (%p18) target = $region8
    $region5: #{tpu_custom_call.1} parent=1 // loop_body
      %s22 = ssub.s32 %s17, 1
      %s23 = ssub.s32 %s17, 2
      %s30 = sadd.s32 1, %s25
      %p31 = scmp.ge.s32.totalorder %s30, 3
      %s32 = scalar_select %p31, 0, %s30
      %s33 = sadd.s32 1, %s24
      %s34 = scalar_select %p31, %s33, %s24
      %p35 = scmp.ge.s32.totalorder %s34, 1
      %s36 = scalar_select %p35, 0, %s34
      %s37 = ssub.s32 %s24, %s36
      %p38 = scmp.eq.s32.totalorder %s37, 0
      %s40 = sadd.s32 %s39, 1
      %s41 = scalar_select %p38, %s39, %s40
      %p44 = pneg %p38
      %p45 = scmp.eq.s32.totalorder %s17, 2
      %p46 = por %p44, %p45
      %p47 = scmp.ne.s32.totalorder %s39, %s42
      %p48 = scmp.eq.s32.totalorder %s17, 0
      %p49 = por %p47, %p48
      %p50 = scmp.ne.s32.totalorder %s39, %s42
      %p51 = scmp.eq.s32.totalorder %s22, 2
      %p52 = por %p50, %p51
      %p53 = scmp.ne.s32.totalorder %s42, %s43
      %p54 = scmp.eq.s32.totalorder %s22, 0
      %p55 = por %p53, %p54
      %p56 = scmp.ne.s32.totalorder %s42, %s43
      %p57 = scmp.eq.s32.totalorder %s23, 2
      %p58 = por %p56, %p57
      %p60 = scmp.ne.s32.totalorder %s43, %s59
      %p61 = scmp.eq.s32.totalorder %s23, 0
      %p62 = por %p60, %p61
      %s64 = sadd.s32 %s63, 1
      %p67 = scmp.eq.s32.totalorder %s17, 2
      %p68 = scmp.ne.s32.totalorder %s63, %s65
      %p69 = scmp.eq.s32.totalorder %s17, 0
      %p70 = por %p68, %p69
      %p71 = scmp.ne.s32.totalorder %s63, %s65
      %p72 = scmp.eq.s32.totalorder %s22, 2
      %p73 = por %p71, %p72
      %p74 = scmp.ne.s32.totalorder %s65, %s66
      %p75 = scmp.eq.s32.totalorder %s22, 0
      %p76 = por %p74, %p75
      %p77 = scmp.ne.s32.totalorder %s65, %s66
      %p78 = scmp.eq.s32.totalorder %s23, 2
      %p79 = por %p77, %p78
      %p81 = scmp.ne.s32.totalorder %s66, %s80
      %p82 = scmp.eq.s32.totalorder %s23, 0
      %p83 = por %p81, %p82
      %s84 = ssub.s32 %s25, %s32
      %p85 = scmp.eq.s32.totalorder %s84, 0
      %s87 = sadd.s32 %s86, 1
      %s88 = scalar_select %p85, %s86, %s87
      %p91 = pneg %p85
      %p92 = scmp.eq.s32.totalorder %s17, 2
      %p93 = por %p91, %p92
      %p94 = scmp.ne.s32.totalorder %s86, %s89
      %p95 = scmp.eq.s32.totalorder %s17, 0
      %p96 = por %p94, %p95
      %p97 = scmp.ne.s32.totalorder %s86, %s89
      %p98 = scmp.eq.s32.totalorder %s22, 2
      %p99 = por %p97, %p98
      %p100 = scmp.ne.s32.totalorder %s89, %s90
      %p101 = scmp.eq.s32.totalorder %s22, 0
      %p102 = por %p100, %p101
      %p103 = scmp.ne.s32.totalorder %s89, %s90
      %p104 = scmp.eq.s32.totalorder %s23, 2
      %p105 = por %p103, %p104
      %p107 = scmp.ne.s32.totalorder %s90, %s106
      %p108 = scmp.eq.s32.totalorder %s23, 0
      %p109 = por %p107, %p108
      %s110 = ssub.s32 %s25, %s32
      %p111 = scmp.eq.s32.totalorder %s110, 0
      %s113 = sadd.s32 %s112, 1
      %s114 = scalar_select %p111, %s112, %s113
      %p117 = pneg %p111
      %p118 = scmp.eq.s32.totalorder %s17, 2
      %p119 = por %p117, %p118
      %p120 = scmp.ne.s32.totalorder %s112, %s115
      %p121 = scmp.eq.s32.totalorder %s17, 0
      %p122 = por %p120, %p121
      %p123 = scmp.ne.s32.totalorder %s112, %s115
      %p124 = scmp.eq.s32.totalorder %s22, 2
      %p125 = por %p123, %p124
      %p126 = scmp.ne.s32.totalorder %s115, %s116
      %p127 = scmp.eq.s32.totalorder %s22, 0
      %p128 = por %p126, %p127
      %p129 = scmp.ne.s32.totalorder %s115, %s116
      %p130 = scmp.eq.s32.totalorder %s23, 2
      %p131 = por %p129, %p130
      %p133 = scmp.ne.s32.totalorder %s116, %s132
      %p134 = scmp.eq.s32.totalorder %s23, 0
      %p135 = por %p133, %p134
      %s136 = ssub.s32 %s24, %s36
      %s137 = ssub.s32 %s25, %s32
      %s138 = sor.u32 %s136, %s137
      %p139 = scmp.eq.s32.totalorder %s138, 0
      %s141 = sadd.s32 %s140, 1
      %s142 = scalar_select %p139, %s140, %s141
      %p145 = pneg %p139
      %p146 = scmp.eq.s32.totalorder %s17, 2
      %p147 = por %p145, %p146
      %p148 = scmp.ne.s32.totalorder %s140, %s143
      %p149 = scmp.eq.s32.totalorder %s17, 0
      %p150 = por %p148, %p149
      %p151 = scmp.ne.s32.totalorder %s140, %s143
      %p152 = scmp.eq.s32.totalorder %s22, 2
      %p153 = por %p151, %p152
      %p154 = scmp.ne.s32.totalorder %s143, %s144
      %p155 = scmp.eq.s32.totalorder %s22, 0
      %p156 = por %p154, %p155
      %p157 = scmp.ne.s32.totalorder %s143, %s144
      %p158 = scmp.eq.s32.totalorder %s23, 2
      %p159 = por %p157, %p158
      %p161 = scmp.ne.s32.totalorder %s144, %s160
      %p162 = scmp.eq.s32.totalorder %s23, 0
      %p163 = por %p161, %p162
      %p164 = scmp.le.s32.totalorder 1, %s17
      %p165 = scmp.lt.s32.totalorder %s17, 4
      %p166 = pnand %p164, %p165
      %p167 = pneg %p166
      // Predicated region
      $region9: #{tpu_custom_call.1} parent=5 // pred_check
        _
      $region10: #{tpu_custom_call.1} parent=5 // pred_check_branch
        %169 = sbr.rel (%p166) target = $region12
      $region11: #{tpu_custom_call.1} parent=5 // pred_region
        %s170 = ssub.s32 %s17, 1
        // Predicated region
        $region13: #{tpu_custom_call.1} parent=11 // pred_check
          %p171 = pneg %p55
        $region14: #{tpu_custom_call.1} parent=11 // pred_check_branch
          %173 = sbr.rel (%p171) target = $region16
        $region15: #{tpu_custom_call.1} parent=11 // pred_region
          %s174 = smul.u32 4, %s26
          %s176 = ssub.s32 1024, 1024
          %177 = vsyncadd [#allocation4], %s176
          %s178 = smul.addr %s174, 2
          %s179 = smul.addr %s178, 128
          %s180 = scalar_lea.hbm %s0, %s179
          %s181 = sshll.u32 [#allocation3], 4
          %s182 = int_to_ptr.vmem [resolvable:$true] %s181
          %187 = dma.hbm_to_vmem [thread:$0]  %s180, 1024, %s182, [#allocation4], 256, 256, 16
        $region16: #{tpu_custom_call.1} parent=11 // pred_fallthru
          _
        // Predicated region
        $region17: #{tpu_custom_call.1} parent=11 // pred_check
          %p188 = pneg %p76
        $region18: #{tpu_custom_call.1} parent=11 // pred_check_branch
          %190 = sbr.rel (%p188) target = $region20
        $region19: #{tpu_custom_call.1} parent=11 // pred_region
          _
        $region20: #{tpu_custom_call.1} parent=11 // pred_fallthru
          _
      $region12: #{tpu_custom_call.1} parent=5 // pred_fallthru
        _
      %p191 = scmp.lt.s32.totalorder %s17, 3
      // Predicated region
      $region21: #{tpu_custom_call.1} parent=5 // pred_check
        %p192 = pneg %p191
      $region22: #{tpu_custom_call.1} parent=5 // pred_check_branch
        %194 = sbr.rel (%p192) target = $region24
      $region23: #{tpu_custom_call.1} parent=5 // pred_region
        // Predicated region
        $region25: #{tpu_custom_call.1} parent=23 // pred_check
          %p195 = pneg %p96
        $region26: #{tpu_custom_call.1} parent=23 // pred_check_branch
          %197 = sbr.rel (%p195) target = $region28
        $region27: #{tpu_custom_call.1} parent=23 // pred_region
          %s198 = sand.u32 %s86, 1
          %s199 = scalar_lea.sflag [#allocation7], %s198
          %s200 = sand.u32 %s86, 1
          %s201 = smul.addr %s200, 256
          %s202 = scalar_lea.vmem [#allocation6], %s201
          %s203 = smul.u32 2, %s25
          %s205 = ssub.s32 4096, 4096
          %206 = vsyncadd %s199, %s205
          %s207 = smul.addr %s203, 64
          %s208 = scalar_lea.hbm %s2, %s207
          %s209 = sshll.u32 %s202, 4
          %s210 = int_to_ptr.vmem [resolvable:$true] %s209
          %215 = dma.hbm_to_vmem [thread:$0]  %s208, 4096, %s210, %s199, 384, 128, 8
        $region28: #{tpu_custom_call.1} parent=23 // pred_fallthru
          _
        // Predicated region
        $region29: #{tpu_custom_call.1} parent=23 // pred_check
          %p216 = pneg %p122
        $region30: #{tpu_custom_call.1} parent=23 // pred_check_branch
          %218 = sbr.rel (%p216) target = $region32
        $region31: #{tpu_custom_call.1} parent=23 // pred_region
          %s219 = smul.u32 2, %s25
          %p220 = scmp.lt.s32.totalorder %s219, 5
          %s221 = scalar_select %p220, %s219, 5
          %s222 = scalar_lea.vmem %s3, %s221
          %s223 = smul.u32 2, %s25
        $region32: #{tpu_custom_call.1} parent=23 // pred_fallthru
          _
      $region24: #{tpu_custom_call.1} parent=5 // pred_fallthru
        _
      %p224 = scmp.le.s32.totalorder 1, %s17
      %p225 = scmp.lt.s32.totalorder %s17, 4
      %p226 = pnand %p224, %p225
      %p227 = pneg %p226
      // Predicated region
      $region33: #{tpu_custom_call.1} parent=5 // pred_check
        _
      $region34: #{tpu_custom_call.1} parent=5 // pred_check_branch
        %229 = sbr.rel (%p226) target = $region36
      $region35: #{tpu_custom_call.1} parent=5 // pred_region
        %s230 = ssub.s32 %s17, 1
        // Predicated region
        $region37: #{tpu_custom_call.1} parent=35 // pred_check
          %p231 = pneg %p55
        $region38: #{tpu_custom_call.1} parent=35 // pred_check_branch
          %233 = sbr.rel (%p231) target = $region40
        $region39: #{tpu_custom_call.1} parent=35 // pred_region
          %234 = dma.done [#allocation4], 1024
        $region40: #{tpu_custom_call.1} parent=35 // pred_fallthru
          _
        %s235 = sand.u32 %s89, 1
        %s236 = scalar_lea.sflag [#allocation7], %s235
        %s237 = sand.u32 %s89, 1
        %s238 = smul.addr %s237, 256
        %s239 = scalar_lea.vmem [#allocation6], %s238
        // Predicated region
        $region41: #{tpu_custom_call.1} parent=35 // pred_check
          %p240 = pneg %p102
        $region42: #{tpu_custom_call.1} parent=35 // pred_check_branch
          %242 = sbr.rel (%p240) target = $region44
        $region43: #{tpu_custom_call.1} parent=35 // pred_region
          %243 = dma.done %s236, 4096
        $region44: #{tpu_custom_call.1} parent=35 // pred_fallthru
          _
        %p244 = pneg %p55
        %p245 = pneg %p52
        %p246 = pneg %p76
        %p247 = pneg %p73
        %s248 = sand.u32 %s89, 1
        %s249 = scalar_lea.sflag [#allocation7], %s248
        %s250 = sand.u32 %s89, 1
        %s251 = smul.addr %s250, 256
        %s252 = scalar_lea.vmem [#allocation6], %s251
        %p253 = pneg %p102
        %p254 = pneg %p99
        %s255 = smul.u32 2, %s27
        %p256 = scmp.lt.s32.totalorder %s255, 5
        %s257 = scalar_select %p256, %s255, 5
        %s258 = scalar_lea.vmem %s3, %s257
        %p259 = pneg %p128
        %p260 = pneg %p125
        %p261 = pneg %p156
        %p262 = pneg %p153
        %s263 = sand.u32 %s143, 1
        %s264 = scalar_lea.sflag [#allocation5], %s263
        %s265 = sand.u32 %s143, 1
        %s266 = smul.addr %s265, 32
        %s267 = scalar_lea.vmem [#allocation8], %s266
        %s268 = smul.u32 4, %s26
        %s269 = smul.u32 2, %s27
        %s270 = smul.u32 2, %s27
        %p271 = scmp.lt.s32.totalorder %s270, 5
        %s272 = scalar_select %p271, %s270, 5
        %s273 = scalar_lea.vmem %s3, %s272
        %s274 = smul.u32 2, %s27
        %s275 = smul.u32 4, %s26
        %s276 = smul.u32 2, %s27
        %p277 = scmp.eq.s32.totalorder %s27, 0
        // Predicated region
        $region45: #{tpu_custom_call.1} parent=35 // pred_check
          %p278 = pneg %p277
        $region46: #{tpu_custom_call.1} parent=35 // pred_check_branch
          %280 = sbr.rel (%p278) target = $region48
        $region47: #{tpu_custom_call.1} parent=35 // pred_region
          %v281 = vld [vmem:[#allocation3] sm:$0xff]
          %v282 = vld [vmem:[#allocation3 + $0x8] sm:$0xff]
          %v283 = vld [vmem:[#allocation3 + $0x10] sm:$0xff]
          %v284 = vld [vmem:[#allocation3 + $0x18] sm:$0xff]
          %v285 = vld [vmem:[#allocation3 + $0x20] sm:$0xff]
          %v286 = vld [vmem:[#allocation3 + $0x28] sm:$0xff]
          %v287 = vld [vmem:[#allocation3 + $0x30] sm:$0xff]
          %v288 = vld [vmem:[#allocation3 + $0x38] sm:$0xff]
          %v289 = vmul.f32 %v281, %v281
          %v290 = vmul.f32 %v282, %v282
          %v291 = vmul.f32 %v283, %v283
          %v292 = vmul.f32 %v284, %v284
          %v293 = vmul.f32 %v285, %v285
          %v294 = vmul.f32 %v286, %v286
          %v295 = vmul.f32 %v287, %v287
          %v296 = vmul.f32 %v288, %v288
          %v297 = vadd.f32 %v289, %v290
          %298 = vadd.xlane.f32.xlu0 %v297
          %v299 = vpop.xlane.xlu0 %298
          %v300 = vadd.f32 %v291, %v292
          %301 = vadd.xlane.f32.xlu0 %v300
          %v302 = vpop.xlane.xlu0 %301
          %v303 = vadd.f32 %v293, %v294
          %304 = vadd.xlane.f32.xlu0 %v303
          %v305 = vpop.xlane.xlu0 %304
          %v306 = vadd.f32 %v295, %v296
          %307 = vadd.xlane.f32.xlu0 %v306
          %v308 = vpop.xlane.xlu0 %307
          %v309 = vrcp.pop 256.0
          %v310 = vmul.f32 %v299, %v309
          %v311 = vmul.f32 %v302, %v309
          %v312 = vmul.f32 %v305, %v309
          %v313 = vmul.f32 %v308, %v309
          %v314 = vadd.f32 %v310, 1e-06
          %v315 = vadd.f32 %v311, 1e-06
          %v316 = vadd.f32 %v312, 1e-06
          %v317 = vadd.f32 %v313, 1e-06
          %v318 = vrsqrt.pop %v314
          %v319 = vrsqrt.pop %v315
          %v320 = vrsqrt.pop %v316
          %v321 = vrsqrt.pop %v317
          %v322 = vmul.f32 %v281, %v318
          %v323 = vmul.f32 %v282, %v318
          %v324 = vmul.f32 %v283, %v319
          %v325 = vmul.f32 %v284, %v319
          %v326 = vmul.f32 %v285, %v320
          %v327 = vmul.f32 %v286, %v320
          %v328 = vmul.f32 %v287, %v321
          %v329 = vmul.f32 %v288, %v321
          %v330 = vld [vmem:[%s1] sm:$0x3]
          %v332 = vlaneseq
          %v333 = vshrl.u32 %v332, 7
          %v334 = vsub.s32 0, %v333
          %v335 = vrot.slane %v330, %v334
          %v336 = vlaneseq
          %v337 = vshrl.u32 %v336, 7
          %v338 = vsub.s32 1, %v337
          %v339 = vrot.slane %v330, %v338
          %v342 = vmul.f32 %v322, %v335
          %v343 = vmul.f32 %v323, %v339
          %v344 = vmul.f32 %v324, %v335
          %v345 = vmul.f32 %v325, %v339
          %v346 = vmul.f32 %v326, %v335
          %v347 = vmul.f32 %v327, %v339
          %v348 = vmul.f32 %v328, %v335
          %v349 = vmul.f32 %v329, %v339
          %v350 = vpack.c.bf16 %v344, %v342
          %v351 = vpack.c.bf16 %v345, %v343
          %v352 = vpack.c.bf16 %v348, %v346
          %v353 = vpack.c.bf16 %v349, %v347
          %354 = vst [vmem:[#allocation2] sm:$0xff] %v350
          %355 = vst [vmem:[#allocation2 + $0x8] sm:$0xff] %v351
          %356 = vst [vmem:[#allocation2 + $0x10] sm:$0xff] %v352
          %357 = vst [vmem:[#allocation2 + $0x18] sm:$0xff] %v353
        $region48: #{tpu_custom_call.1} parent=35 // pred_fallthru
          _
        %v358 = vld [vmem:[#allocation2] sm:$0xff]
        %v359 = vld [vmem:[#allocation2 + $0x8] sm:$0xff]
        %v360 = vld [vmem:[#allocation2 + $0x10] sm:$0xff]
        %v361 = vld [vmem:[#allocation2 + $0x18] sm:$0xff]
        %v362 = vld [vmem:[%s239] sm:$0xff]
        %v363 = vld [vmem:[%s239 + $0x8] sm:$0xff]
        %v364 = vld [vmem:[%s239 + $0x10] sm:$0xff]
        %v365 = vld [vmem:[%s239 + $0x18] sm:$0xff]
        %v366 = vld [vmem:[%s239 + $0x20] sm:$0xff]
        %v367 = vld [vmem:[%s239 + $0x28] sm:$0xff]
        %v368 = vld [vmem:[%s239 + $0x30] sm:$0xff]
        %v369 = vld [vmem:[%s239 + $0x38] sm:$0xff]
        %v370 = vld [vmem:[%s239 + $0x40] sm:$0xff]
        %v371 = vld [vmem:[%s239 + $0x48] sm:$0xff]
        %v372 = vld [vmem:[%s239 + $0x50] sm:$0xff]
        %v373 = vld [vmem:[%s239 + $0x58] sm:$0xff]
        %v374 = vld [vmem:[%s239 + $0x60] sm:$0xff]
        %v375 = vld [vmem:[%s239 + $0x68] sm:$0xff]
        %v376 = vld [vmem:[%s239 + $0x70] sm:$0xff]
        %v377 = vld [vmem:[%s239 + $0x78] sm:$0xff]
        %v378 = vld [vmem:[%s239 + $0x80] sm:$0xff]
        %v379 = vld [vmem:[%s239 + $0x88] sm:$0xff]
        %v380 = vld [vmem:[%s239 + $0x90] sm:$0xff]
        %v381 = vld [vmem:[%s239 + $0x98] sm:$0xff]
        %v382 = vld [vmem:[%s239 + $0xa0] sm:$0xff]
        %v383 = vld [vmem:[%s239 + $0xa8] sm:$0xff]
        %v384 = vld [vmem:[%s239 + $0xb0] sm:$0xff]
        %v385 = vld [vmem:[%s239 + $0xb8] sm:$0xff]
        %v386 = vld [vmem:[%s239 + $0xc0] sm:$0xff]
        %v387 = vld [vmem:[%s239 + $0xc8] sm:$0xff]
        %v388 = vld [vmem:[%s239 + $0xd0] sm:$0xff]
        %v389 = vld [vmem:[%s239 + $0xd8] sm:$0xff]
        %v390 = vld [vmem:[%s239 + $0xe0] sm:$0xff]
        %v391 = vld [vmem:[%s239 + $0xe8] sm:$0xff]
        %v392 = vld [vmem:[%s239 + $0xf0] sm:$0xff]
        %v393 = vld [vmem:[%s239 + $0xf8] sm:$0xff]
        %v394 = vld [vmem:[%s273] sm:$0x3]
        %v396 = vlaneseq
        %v397 = vshrl.u32 %v396, 7
        %v398 = vsub.s32 0, %v397
        %v399 = vrot.slane %v394, %v398
        %v400 = vlaneseq
        %v401 = vshrl.u32 %v400, 7
        %v402 = vsub.s32 1, %v401
        %v403 = vrot.slane %v394, %v402
        %v438 = vunpack.c.l.b16 %v362
        %v439 = vunpack.c.h.b16 %v362
        %v440 = vunpack.c.l.b16 %v363
        %v441 = vunpack.c.h.b16 %v363
        %v442 = vunpack.c.l.b16 %v364
        %v443 = vunpack.c.h.b16 %v364
        %v444 = vunpack.c.l.b16 %v365
        %v445 = vunpack.c.h.b16 %v365
        %v446 = vunpack.c.l.b16 %v366
        %v447 = vunpack.c.h.b16 %v366
        %v448 = vunpack.c.l.b16 %v367
        %v449 = vunpack.c.h.b16 %v367
        %v450 = vunpack.c.l.b16 %v368
        %v451 = vunpack.c.h.b16 %v368
        %v452 = vunpack.c.l.b16 %v369
        %v453 = vunpack.c.h.b16 %v369
        %v454 = vunpack.c.l.b16 %v370
        %v455 = vunpack.c.h.b16 %v370
        %v456 = vunpack.c.l.b16 %v371
        %v457 = vunpack.c.h.b16 %v371
        %v458 = vunpack.c.l.b16 %v372
        %v459 = vunpack.c.h.b16 %v372
        %v460 = vunpack.c.l.b16 %v373
        %v461 = vunpack.c.h.b16 %v373
        %v462 = vunpack.c.l.b16 %v374
        %v463 = vunpack.c.h.b16 %v374
        %v464 = vunpack.c.l.b16 %v375
        %v465 = vunpack.c.h.b16 %v375
        %v466 = vunpack.c.l.b16 %v376
        %v467 = vunpack.c.h.b16 %v376
        %v468 = vunpack.c.l.b16 %v377
        %v469 = vunpack.c.h.b16 %v377
        %v470 = vunpack.c.l.b16 %v378
        %v471 = vunpack.c.h.b16 %v378
        %v472 = vunpack.c.l.b16 %v379
        %v473 = vunpack.c.h.b16 %v379
        %v474 = vunpack.c.l.b16 %v380
        %v475 = vunpack.c.h.b16 %v380
        %v476 = vunpack.c.l.b16 %v381
        %v477 = vunpack.c.h.b16 %v381
        %v478 = vunpack.c.l.b16 %v382
        %v479 = vunpack.c.h.b16 %v382
        %v480 = vunpack.c.l.b16 %v383
        %v481 = vunpack.c.h.b16 %v383
        %v482 = vunpack.c.l.b16 %v384
        %v483 = vunpack.c.h.b16 %v384
        %v484 = vunpack.c.l.b16 %v385
        %v485 = vunpack.c.h.b16 %v385
        %v486 = vunpack.c.l.b16 %v386
        %v487 = vunpack.c.h.b16 %v386
        %v488 = vunpack.c.l.b16 %v387
        %v489 = vunpack.c.h.b16 %v387
        %v490 = vunpack.c.l.b16 %v388
        %v491 = vunpack.c.h.b16 %v388
        %v492 = vunpack.c.l.b16 %v389
        %v493 = vunpack.c.h.b16 %v389
        %v494 = vunpack.c.l.b16 %v390
        %v495 = vunpack.c.h.b16 %v390
        %v496 = vunpack.c.l.b16 %v391
        %v497 = vunpack.c.h.b16 %v391
        %v498 = vunpack.c.l.b16 %v392
        %v499 = vunpack.c.h.b16 %v392
        %v500 = vunpack.c.l.b16 %v393
        %v501 = vunpack.c.h.b16 %v393
        %v502 = vpack.c.b16 %v440, %v438
        %v503 = vpack.c.b16 %v441, %v439
        %v504 = vpack.c.b16 %v444, %v442
        %v505 = vpack.c.b16 %v445, %v443
        %v506 = vpack.c.b16 %v448, %v446
        %v507 = vpack.c.b16 %v449, %v447
        %v508 = vpack.c.b16 %v452, %v450
        %v509 = vpack.c.b16 %v453, %v451
        %v510 = vpack.c.b16 %v456, %v454
        %v511 = vpack.c.b16 %v457, %v455
        %v512 = vpack.c.b16 %v460, %v458
        %v513 = vpack.c.b16 %v461, %v459
        %v514 = vpack.c.b16 %v464, %v462
        %v515 = vpack.c.b16 %v465, %v463
        %v516 = vpack.c.b16 %v468, %v466
        %v517 = vpack.c.b16 %v469, %v467
        %v518 = vpack.c.b16 %v472, %v470
        %v519 = vpack.c.b16 %v473, %v471
        %v520 = vpack.c.b16 %v476, %v474
        %v521 = vpack.c.b16 %v477, %v475
        %v522 = vpack.c.b16 %v480, %v478
        %v523 = vpack.c.b16 %v481, %v479
        %v524 = vpack.c.b16 %v484, %v482
        %v525 = vpack.c.b16 %v485, %v483
        %v526 = vpack.c.b16 %v488, %v486
        %v527 = vpack.c.b16 %v489, %v487
        %v528 = vpack.c.b16 %v492, %v490
        %v529 = vpack.c.b16 %v493, %v491
        %v530 = vpack.c.b16 %v496, %v494
        %v531 = vpack.c.b16 %v497, %v495
        %v532 = vpack.c.b16 %v500, %v498
        %v533 = vpack.c.b16 %v501, %v499
        %566 = vmatprep.subr.bf16.mxu0 %v503
        %567 = vmatpush1.bf16.msra.mxu0 %v502
        %568 = vmatprep.subr.bf16.mxu0 %v505
        %569 = vmatpush1.bf16.msra.mxu0 %v504
        %570 = vmatprep.subr.bf16.mxu0 %v507
        %571 = vmatpush1.bf16.msra.mxu0 %v506
        %572 = vmatprep.subr.bf16.mxu0 %v509
        %573 = vmatpush1.bf16.msra.mxu0 %v508
        %574 = vmatprep.subr.bf16.mxu0 %v511
        %575 = vmatpush1.bf16.msra.mxu0 %v510
        %576 = vmatprep.subr.bf16.mxu0 %v513
        %577 = vmatpush1.bf16.msra.mxu0 %v512
        %578 = vmatprep.subr.bf16.mxu0 %v515
        %579 = vmatpush1.bf16.msra.mxu0 %v514
        %580 = vmatprep.subr.bf16.mxu0 %v517
        %581 = vmatpush1.bf16.msra.mxu0 %v516
        %582 = vmatprep.subr.bf16.mxu0 %v519
        %583 = vmatpush1.bf16.msra.mxu0 %v518
        %584 = vmatprep.subr.bf16.mxu0 %v521
        %585 = vmatpush1.bf16.msra.mxu0 %v520
        %586 = vmatprep.subr.bf16.mxu0 %v523
        %587 = vmatpush1.bf16.msra.mxu0 %v522
        %588 = vmatprep.subr.bf16.mxu0 %v525
        %589 = vmatpush1.bf16.msra.mxu0 %v524
        %590 = vmatprep.subr.bf16.mxu0 %v527
        %591 = vmatpush1.bf16.msra.mxu0 %v526
        %592 = vmatprep.subr.bf16.mxu0 %v529
        %593 = vmatpush1.bf16.msra.mxu0 %v528
        %594 = vmatprep.subr.bf16.mxu0 %v531
        %595 = vmatpush1.bf16.msra.mxu0 %v530
        %596 = vmatprep.subr.bf16.mxu0 %v533
        %597 = vmatpush1.bf16.msra.mxu0 %v532
        %598 = vmatprep.mubr.bf16.mxu0 %v359
        %599 = vmatmul.mubr.bf16.gmra.mrb[0].mxu0 %v358
        %v600 = vpop.f32.mrb[0].mxu0
        %v601 = vadd.f32 %v399, %v600
        %v602 = vpop.f32.mrb[0].mxu0
        %v603 = vadd.f32 %v403, %v602
        %v604 = vpop.f32.mrb[0].mxu0
        %v605 = vadd.f32 %v399, %v604
        %v606 = vpop.f32.mrb[0].mxu0
        %v607 = vadd.f32 %v403, %v606
        %608 = vmatprep.mubr.bf16.mxu0 %v361
        %609 = vmatmul.mubr.bf16.gmra.mrb[0].mxu0 %v360
        %v610 = vpop.f32.mrb[0].mxu0
        %v611 = vadd.f32 %v399, %v610
        %v612 = vpop.f32.mrb[0].mxu0
        %v613 = vadd.f32 %v403, %v612
        %v614 = vpop.f32.mrb[0].mxu0
        %v615 = vadd.f32 %v399, %v614
        %v616 = vpop.f32.mrb[0].mxu0
        %v617 = vadd.f32 %v403, %v616
        %618 = vdwg.mxu0
        %v619 = vpack.c.bf16 %v605, %v601
        %v620 = vpack.c.bf16 %v607, %v603
        %v621 = vpack.c.bf16 %v615, %v611
        %v622 = vpack.c.bf16 %v617, %v613
        %v627 = vunpack.c.l.b16 %v619
        %v628 = vunpack.c.l.b16 %v620
        %v629 = vunpack.c.h.b16 %v619
        %v630 = vunpack.c.h.b16 %v620
        %v631 = vunpack.c.l.b16 %v621
        %v632 = vunpack.c.l.b16 %v622
        %v633 = vunpack.c.h.b16 %v621
        %v634 = vunpack.c.h.b16 %v622
        %v635 = vpack.c.b16 %v628, %v627
        %v636 = vpack.c.b16 %v630, %v629
        %v637 = vpack.c.b16 %v632, %v631
        %v638 = vpack.c.b16 %v634, %v633
        %643 = vst [vmem:[%s267] sm:$0xff] %v635
        %644 = vst [vmem:[%s267 + $0x8] sm:$0xff] %v636
        %645 = vst [vmem:[%s267 + $0x10] sm:$0xff] %v637
        %646 = vst [vmem:[%s267 + $0x18] sm:$0xff] %v638
        %s647 = sand.u32 %s143, 1
        %s648 = scalar_lea.sflag [#allocation5], %s647
        %s649 = sand.u32 %s143, 1
        %s650 = smul.addr %s649, 32
        %s651 = scalar_lea.vmem [#allocation8], %s650
        // Predicated region
        $region49: #{tpu_custom_call.1} parent=35 // pred_check
          %p652 = pneg %p153
        $region50: #{tpu_custom_call.1} parent=35 // pred_check_branch
          %654 = sbr.rel (%p652) target = $region52
        $region51: #{tpu_custom_call.1} parent=35 // pred_region
          %s655 = smul.u32 4, %s26
          %s656 = smul.u32 2, %s27
          %s658 = ssub.s32 512, 512
          %659 = vsyncadd %s648, %s658
          %s660 = smul.addr %s655, 6
          %s661 = sadd.s32 %s656, %s660
          %s662 = smul.addr %s661, 64
          %s663 = scalar_lea.hbm %s4, %s662
          %s664 = sshll.u32 %s651, 4
          %s665 = int_to_ptr.vmem [resolvable:$true] %s664
          %670 = dma.vmem_to_hbm [thread:$0]  %s665, 512, %s663, %s648, 128, 384, 8
        $region52: #{tpu_custom_call.1} parent=35 // pred_fallthru
          _
      $region36: #{tpu_custom_call.1} parent=5 // pred_fallthru
        _
      %p671 = scmp.le.s32.totalorder 2, %s17
      // Predicated region
      $region53: #{tpu_custom_call.1} parent=5 // pred_check
        %p672 = pneg %p671
      $region54: #{tpu_custom_call.1} parent=5 // pred_check_branch
        %674 = sbr.rel (%p672) target = $region56
      $region55: #{tpu_custom_call.1} parent=5 // pred_region
        %s675 = ssub.s32 %s17, 2
        // Predicated region
        $region57: #{tpu_custom_call.1} parent=55 // pred_check
          %p676 = pneg %p159
        $region58: #{tpu_custom_call.1} parent=55 // pred_check_branch
          %678 = sbr.rel (%p676) target = $region60
        $region59: #{tpu_custom_call.1} parent=55 // pred_region
          %s679 = sand.u32 %s144, 1
          %s680 = scalar_lea.sflag [#allocation5], %s679
          %s681 = sand.u32 %s144, 1
          %s682 = smul.addr %s681, 32
          %s683 = scalar_lea.vmem [#allocation8], %s682
          %684 = dma.done %s680, 512
        $region60: #{tpu_custom_call.1} parent=55 // pred_fallthru
          _
      $region56: #{tpu_custom_call.1} parent=5 // pred_fallthru
        _
    $region6: #{tpu_custom_call.1} parent=1 // loop_footer
      %s21 = sadd.s32 1, %s17
    $region7: #{tpu_custom_call.1} parent=1 // loop_footer_branch
      %16 = sbr.rel target = $region3
    $region8: #{tpu_custom_call.1} parent=1 // loop_exit
      _
    %685 = vsyncpa [#allocation4], 1
    %s686 = scalar_lea.sflag [#allocation4], 1
    %687 = vsyncpa %s686, 1
    %688 = vsyncpa [#allocation7], 1
    %s689 = scalar_lea.sflag [#allocation7], 1
    %690 = vsyncpa %s689, 1
    %691 = vsyncpa [#allocation5], 1
    %s692 = scalar_lea.sflag [#allocation5], 1
    %693 = vsyncpa %s692, 1

</llo_original>
